<compile_context>
chip_gen: v5e
topology: v5e:2x2
jax: 0.10.0
libtpu: 0.0.40
codegen_flags: <defaults>
</compile_context>

<pallas_src>
import functools
from collections import namedtuple

import jax
import jax.numpy as jnp
from jax import lax
from jax.experimental import pallas as pl
from jax.experimental.pallas import tpu as pltpu

_EPS = 1e-8          # matches torch F.cosine_similarity eps
_NEG_BIG = -1e30     # additive mask for padded columns (avoids inf-inf NaNs)


def _round_up(x, m):
    return (x + m - 1) // m * m


def _vmem_budget_bytes():
    """Generation-dependent scoped-VMEM budget (~70% of physical capacity).
    v7x: 64 MiB -> ~45 MiB usable; v5e/v6e: 128 MiB -> ~90 MiB usable."""
    try:
        info = pltpu.get_tpu_info()
        cap = int(getattr(info, "vmem_capacity_bytes", 0) or 0)
        if 16 * 1024 * 1024 <= cap <= 512 * 1024 * 1024:
            return min(int(cap * 0.70), 100 * 1024 * 1024)
    except Exception:
        pass
    return 48 * 1024 * 1024


# --------------------------------------------------------------------------
# pass 1: row-wise L2 normalization -> bf16 MXU operand only
# --------------------------------------------------------------------------
def _normalize_kernel(x_ref, xn_bf16_ref):
    x = x_ref[...]                                   # f32 tile
    sumsq = jnp.sum(x * x, axis=-1, keepdims=True)
    inv_norm = lax.rsqrt(jnp.maximum(sumsq, _EPS * _EPS))   # == 1/max(||x||,eps)
    xn_bf16_ref[...] = (x * inv_norm).astype(jnp.bfloat16)


# --------------------------------------------------------------------------
# pass 2: tiled cosine-sim matmul + online-softmax row logsumexp
# --------------------------------------------------------------------------
def _sim_lse_kernel(row_ref, col_ref, bias_ref, lse_ref, m_sc, s_sc, *,
                    inv_temp, col_tile, resident_cols):
    j = pl.program_id(1)

    @pl.when(j == 0)
    def _init():
        m_sc[...] = jnp.full(m_sc.shape, _NEG_BIG, jnp.float32)
        s_sc[...] = jnp.zeros(s_sc.shape, jnp.float32)

    if resident_cols:
        # whole bf16 matrix lives in VMEM; slice the current column sub-tile
        start = pl.multiple_of(j * col_tile, col_tile)
        col = col_ref[pl.ds(start, col_tile), :]
    else:
        col = col_ref[...]

    # [TM, TN] similarity tile: bf16 operands, f32 accumulation on the MXU.
    sim = lax.dot_general(
        row_ref[...], col,
        dimension_numbers=(((1,), (1,)), ((), ())),
        preferred_element_type=jnp.float32)

    # additive column mask (0 for valid cols, -1e30 for padded cols):
    # single VPU add per element instead of iota+cmp+select every step.
    scaled = sim * inv_temp + bias_ref[...]

    m_prev = m_sc[...]
    m_new = jnp.maximum(m_prev, jnp.max(scaled, axis=-1, keepdims=True))
    alpha = jnp.exp(m_prev - m_new)
    s_sc[...] = alpha * s_sc[...] + jnp.sum(jnp.exp(scaled - m_new),
                                            axis=-1, keepdims=True)
    m_sc[...] = m_new

    @pl.when(j == pl.num_programs(1) - 1)
    def _finalize():
        lse = m_sc[...] + jnp.log(s_sc[...])                 # [TM, 1]
        # lane-dense (unmasked) store; wrapper reads lane 0
        lse_ref[...] = jnp.broadcast_to(lse, lse_ref.shape)


def _pick_tiles(n, dp, budget):
    """Decoupled row tile (TM) / col tile (TN), sized from N and VMEM budget."""
    np128 = _round_up(max(n, 1), 128)
    if np128 >= 2048:
        tm = 1024           # above the v6e MXU/HBM crossover when streaming
    elif np128 >= 1024:
        tm = 512
    elif np128 >= 512:
        tm = 256
    else:
        tm = 128
    tn = 512 if np128 >= 512 else 128
    tm = min(tm, np128)
    tn = min(tn, np128)

    def pass2_stream_bytes(tm_, tn_):
        return (2 * tm_ * dp * 2       # row tile (bf16, double buffered)
                + 2 * tn_ * dp * 2     # streamed col tile (bf16, double buffered)
                + 2 * tn_ * 4          # bias tile
                + 2 * tm_ * 128 * 4    # lane-dense lse output tile
                + 2 * tm_ * 4          # m/s scratch
                + tm_ * tn_ * 4)       # sim intermediate

    while pass2_stream_bytes(tm, tn) > budget and tm > 128:
        tm //= 2
    while pass2_stream_bytes(tm, tn) > budget and tn > 128:
        tn //= 2
    return tm, tn


def infonce_embed_stats(embeddings, temperature, *, force_streaming=False):
    """Returns lse[N] = logsumexp_j(cos(x_i, x_j) / T) without materializing
    the NxN similarity matrix in HBM."""
    n, d = embeddings.shape
    budget = _vmem_budget_bytes()
    dp = _round_up(max(d, 1), 128)
    tm, tn = _pick_tiles(n, dp, budget)
    np_ = _round_up(max(n, 1), max(tm, tn))

    x = jnp.asarray(embeddings, jnp.float32)
    x = jnp.pad(x, ((0, np_ - n), (0, dp - d)))
    # TODO(synk): fold the pad/cast into pass 1 (ragged-edge masking in-kernel)
    # to save one extra HBM read+write of the input for very large N*D.

    # ---- pass 1: normalize (bf16 output only) ----
    tile1 = 128
    for cand in (512, 256):
        if np_ % cand == 0 and 12 * cand * dp <= budget:
            tile1 = cand
            break
    xn_bf16 = pl.pallas_call(
        _normalize_kernel,
        grid_spec=pltpu.PrefetchScalarGridSpec(
            num_scalar_prefetch=0,
            grid=(np_ // tile1,),
            in_specs=[pl.BlockSpec((tile1, dp), lambda i: (i, 0))],
            out_specs=pl.BlockSpec((tile1, dp), lambda i: (i, 0)),
        ),
        out_shape=jax.ShapeDtypeStruct((np_, dp), jnp.bfloat16),
        compiler_params=pltpu.CompilerParams(
            dimension_semantics=("parallel",),
            vmem_limit_bytes=budget),
    )(x)

    # additive column mask: 0 for valid columns, -1e30 for padded columns.
    col_bias = jnp.where(jnp.arange(np_) < n, 0.0, _NEG_BIG
                         ).astype(jnp.float32).reshape(1, np_)

    # ---- resident vs streamed column operand ----
    resident_bytes = (2 * np_ * dp * 2        # whole bf16 matrix (2x buffering safety)
                      + 2 * tm * dp * 2       # row tile
                      + 2 * tn * 4            # bias tile
                      + 2 * tm * 128 * 4      # lse output tile
                      + 2 * tm * 4            # scratch
                      + tm * tn * 4)          # sim intermediate
    use_resident = (not force_streaming) and resident_bytes <= budget

    if use_resident:
        # constant block index -> fetched once, fully MXU-bound pass 2
        col_spec = pl.BlockSpec((np_, dp), lambda i, j: (0, 0))
    else:
        col_spec = pl.BlockSpec((tn, dp), lambda i, j: (j, 0))
        # TODO(synk): if DMA latency is still exposed at small Dp, add
        # pipeline_mode=pl.Buffered(3) to this streamed spec and sweep 2 vs 3.

    kernel = functools.partial(
        _sim_lse_kernel,
        inv_temp=float(1.0 / temperature),
        col_tile=tn,
        resident_cols=use_resident)

    lse_wide = pl.pallas_call(
        kernel,
        grid_spec=pltpu.PrefetchScalarGridSpec(
            num_scalar_prefetch=0,
            grid=(np_ // tm, np_ // tn),               # (row tiles, col tiles)
            in_specs=[pl.BlockSpec((tm, dp), lambda i, j: (i, 0)),
                      col_spec,
                      pl.BlockSpec((1, tn), lambda i, j: (0, j))],
            out_specs=pl.BlockSpec((tm, 128), lambda i, j: (i, 0)),
            scratch_shapes=[pltpu.VMEM((tm, 1), jnp.float32),   # running max
                            pltpu.VMEM((tm, 1), jnp.float32)],  # running sum
        ),
        out_shape=jax.ShapeDtypeStruct((np_, 128), jnp.float32),
        compiler_params=pltpu.CompilerParams(
            dimension_semantics=("parallel", "arbitrary"),
            vmem_limit_bytes=budget),
    )(xn_bf16, xn_bf16, col_bias)

    return lse_wide[:n, 0]


BatchInfo = namedtuple(
    "BatchInfo",
    ["pair_indices", "anchor_indices", "positive_pairs", "negative_pairs"],
)


def _l2_normalize_rows(x):
    x = x.astype(jnp.float32)
    sumsq = jnp.sum(x * x, axis=-1, keepdims=True)
    return x * lax.rsqrt(jnp.maximum(sumsq, _EPS * _EPS))


class InfoNCELossPallas:
    """JAX/Pallas port of InfoNCELoss (embedding-model forward path)."""

    def __init__(self, temperature=0.07):
        self.temperature = float(temperature)

    def forward(self, embeddings, batch_info):
        # is_embedding_model branch (len(pair_indices) == 0)
        assert len(batch_info.pair_indices) == 0, \
            "only the embedding-model path is implemented"
        # TODO(synk): matching-model path (_forward_matching / strict_matching) not ported.

        emb = jnp.asarray(embeddings, jnp.float32)
        lse = infonce_embed_stats(emb, self.temperature)

        pos_pairs = [(a, p) for a in batch_info.anchor_indices
                     for (aa, p) in batch_info.positive_pairs if aa == a]
        neg_pairs = [(a, n) for a in batch_info.anchor_indices
                     for (aa, n) in batch_info.negative_pairs if aa == a]

        def _pair_sims(pairs):
            # exact f32 cosine sims for only the rows that are actually needed
            ai = jnp.asarray([a for a, _ in pairs], dtype=jnp.int32)
            bi = jnp.asarray([b for _, b in pairs], dtype=jnp.int32)
            xa = _l2_normalize_rows(emb[ai])
            xb = _l2_normalize_rows(emb[bi])
            return jnp.sum(xa * xb, axis=-1)

        if pos_pairs:
            a_idx = jnp.asarray([a for a, _ in pos_pairs], dtype=jnp.int32)
            pos_sims = _pair_sims(pos_pairs)
            per_pair_ce = lse[a_idx] - pos_sims / self.temperature
            loss = jnp.sum(per_pair_ce) / len(pos_pairs)
            pos_sim = jnp.mean(pos_sims)
        else:
            loss = jnp.float32(0.0)
            pos_sim = jnp.float32(0.0)

        if neg_pairs:
            neg_sim = jnp.mean(_pair_sims(neg_pairs))
        else:
            neg_sim = jnp.float32(0.0)

        metrics = {"pos_similarity": pos_sim, "neg_similarity": neg_sim}
        return loss, None, metrics


# --------------------------------------------------------------------------
# pure-JAX references for correctness checks
# --------------------------------------------------------------------------
def _reference_stats(x, temperature, quantize_bf16=True):
    x = x.astype(jnp.float32)
    norms = jnp.maximum(jnp.sqrt(jnp.sum(x * x, axis=-1, keepdims=True)), _EPS)
    xn = x / norms
    xmm = xn.astype(jnp.bfloat16).astype(jnp.float32) if quantize_bf16 else xn
    sim = xmm @ xmm.T
    lse = jax.scipy.special.logsumexp(sim / temperature, axis=-1)
    return xn, lse


def _reference_loss(x, batch_info, temperature, quantize_bf16=True):
    xn, lse = _reference_stats(x, temperature, quantize_bf16)
    pairs = [(a, p) for a in batch_info.anchor_indices
             for (aa, p) in batch_info.positive_pairs if aa == a]
    terms = [lse[a] - jnp.dot(xn[a], xn[p]) / temperature for a, p in pairs]
    return sum(terms) / max(1, len(pairs))


if __name__ == "__main__":
    # ---- shape implied by the module: batch of 8 tree embeddings, hidden 32 ----
    N, D = 8, 32
    key = jax.random.PRNGKey(0)
    embeddings = jax.random.normal(key, (N, D), dtype=jnp.float32)

    batch_info = BatchInfo(
        pair_indices=[],
        anchor_indices=[0, 2, 4, 6],
        positive_pairs=[(0, 1), (2, 3), (4, 5), (6, 7)],
        negative_pairs=[(0, 3), (0, 5), (2, 1), (2, 7), (4, 7), (6, 1)],
    )

    loss_fn = InfoNCELossPallas(temperature=0.07)
    loss, _, metrics = loss_fn.forward(embeddings, batch_info)
    loss = jax.block_until_ready(loss)
    pos_sim = jax.block_until_ready(metrics["pos_similarity"])
    neg_sim = jax.block_until_ready(metrics["neg_similarity"])

    # reference matching the kernel pipeline (bf16 MXU operands for the LSE)
    ref_matched = float(_reference_loss(embeddings, batch_info, 0.07, True))
    # full-f32 reference (torch semantics); looser tol covers bf16 MXU rounding
    ref_f32 = float(_reference_loss(embeddings, batch_info, 0.07, False))
    assert abs(float(loss) - ref_matched) < 2e-2, (float(loss), ref_matched)
    assert abs(float(loss) - ref_f32) < 2.5e-1, (float(loss), ref_f32)

    # metrics use exact f32 gathers -> tight check
    xn_ref, _ = _reference_stats(embeddings, 0.07, False)
    pos_ref = float(jnp.mean(jnp.stack(
        [jnp.dot(xn_ref[a], xn_ref[p]) for a, p in batch_info.positive_pairs])))
    neg_ref = float(jnp.mean(jnp.stack(
        [jnp.dot(xn_ref[a], xn_ref[n]) for a, n in batch_info.negative_pairs])))
    assert abs(float(pos_sim) - pos_ref) < 1e-4, (float(pos_sim), pos_ref)
    assert abs(float(neg_sim) - neg_ref) < 1e-4, (float(neg_sim), neg_ref)

    # ---- larger non-aligned shape: multi-tile grid + column masking ----
    N2, D2 = 300, 160
    x2 = jax.random.normal(jax.random.PRNGKey(1), (N2, D2), dtype=jnp.float32)
    _, lse2_ref = _reference_stats(x2, 0.1, True)

    # VMEM-resident column operand path (default for this size)
    lse2_res = jax.block_until_ready(infonce_embed_stats(x2, 0.1))
    assert float(jnp.max(jnp.abs(lse2_res - lse2_ref))) < 2e-2

    # streamed column operand path (forced), exercises the streaming BlockSpec
    lse2_str = jax.block_until_ready(
        infonce_embed_stats(x2, 0.1, force_streaming=True))
    assert float(jnp.max(jnp.abs(lse2_str - lse2_ref))) < 2e-2

    print("KERNEL_OK")
</pallas_src>

<mosaic_0001>
module attributes {stable_mosaic.version = 11 : i64} {
  func.func @_normalize_kernel(%arg0: i32, %arg1: memref<128x128xf32, #tpu.memory_space<vmem>>, %arg2: memref<128x128xbf16, #tpu.memory_space<vmem>>) attributes {dimension_semantics = [#tpu.dimension_semantics<parallel>], iteration_bounds = array<i64: 1>, scalar_prefetch = 0 : i64, scratch_operands = 0 : i64, tpu.core_type = #tpu.core_type<tc>, window_params = [{transform_indices = @transform_0, window_bounds = array<i64: 128, 128>}, {transform_indices = @transform_1, window_bounds = array<i64: 128, 128>}]} {
    %c0 = arith.constant 0 : index
    %c0_0 = arith.constant 0 : index
    %0 = vector.load %arg1[%c0, %c0_0] : memref<128x128xf32, #tpu.memory_space<vmem>>, vector<128x128xf32>
    %1 = arith.mulf %0, %0 : vector<128x128xf32>
    %cst = arith.constant dense<0.000000e+00> : vector<128xf32>
    %2 = vector.multi_reduction <add>, %1, %cst [1] : vector<128x128xf32> to vector<128xf32>
    %3 = vector.shape_cast %2 : vector<128xf32> to vector<128x1xf32>
    %cst_1 = arith.constant 1.000000e-16 : f32
    %4 = vector.broadcast %cst_1 : f32 to vector<128x1xf32>
    %5 = arith.maximumf %3, %4 : vector<128x1xf32>
    %6 = math.rsqrt %5 : vector<128x1xf32>
    %7 = vector.broadcast %6 : vector<128x1xf32> to vector<128x128xf32>
    %8 = arith.mulf %0, %7 : vector<128x128xf32>
    %9 = arith.truncf %8 : vector<128x128xf32> to vector<128x128xbf16>
    %c0_2 = arith.constant 0 : index
    %c0_3 = arith.constant 0 : index
    %10 = vector.load %arg2[%c0_2, %c0_3] : memref<128x128xbf16, #tpu.memory_space<vmem>>, vector<128x128xbf16>
    tpu.vector_store %arg2[%c0_2, %c0_3], %9 {strides = array<i32>} : memref<128x128xbf16, #tpu.memory_space<vmem>>, vector<128x128xbf16>,
    return
  }
  func.func @transform_0(%arg0: i32) -> (i32, i32) {
    %c0_i32 = arith.constant 0 : i32
    %c0_i32_0 = arith.constant 0 : i32
    return %arg0, %c0_i32 : i32, i32
  }
  func.func @transform_1(%arg0: i32) -> (i32, i32) {
    %c0_i32 = arith.constant 0 : i32
    %c0_i32_0 = arith.constant 0 : i32
    return %arg0, %c0_i32 : i32, i32
  }
}

</mosaic_0001>

<llo_original>
// kernel: tpu_custom_call.1
$region0: #{tpu_custom_call.1}
  #allocation0 [shape = 'u32[]', space=smem, size = 0x4, offset = 0x4, fixed_abs, tag = 'smem constant byte address 0x4 - core index']
  #allocation1 [shape = 'u32[72,128]{1,0:T(1,128)}', space=vmem, size = 0x9000, scoped, tag = 'internal scratch']
  %s0 = inlined_call_operand.hbm [shape: f32[128,128], index: 0, kind: input, shape index: {}]
  %s1 = inlined_call_operand.hbm [shape: bf16[128,128], index: 1, kind: output, shape index: {}]
  %s2 = sld [smem:[#allocation0]]
  $region18: #{tpu_custom_call.1} parent=0
    _
  %s4 = ssub.s32 1, %s2
  %s5 = scalar_select 0, %s4, %s2
  $region1: #{tpu_custom_call.1} parent=0
    #allocation2 [shape = 'u8[65536]{0}', space=vmem, size = 0x10000, scoped, tag = 'input window, operand 0, single buffered']
    #allocation3 [shape = 's32[1]{0}', space=sflag, size = 0x4, scoped, tag = 'scoped memory for tpu_custom_call.1']
    #allocation4 [shape = 's32[1]{0}', space=sflag, size = 0x4, scoped, tag = 'scoped memory for tpu_custom_call.1']
    #allocation5 [shape = 'u8[32768]{0}', space=vmem, size = 0x8000, scoped, tag = 'output window, operand 0, single buffered']
    %6 = vsyncpa [#allocation3], 0
    %7 = vsyncpa [#allocation4], 0
    // Predicated region
    $region2: #{tpu_custom_call.1} parent=1 // pred_check
      _
    $region3: #{tpu_custom_call.1} parent=1 // pred_check_branch
      %9 = sbr.rel (0) target = $region5
    $region4: #{tpu_custom_call.1} parent=1 // pred_region
      %11 = vsyncadd [#allocation3], 0
      %s12 = sshll.u32 %s0, 4
      %s13 = int_to_ptr.hbm [resolvable:$true] %s12
      %s14 = sshll.u32 [#allocation2], 4
      %s15 = int_to_ptr.vmem [resolvable:$true] %s14
      %20 = dma.hbm_to_vmem [thread:$0]  %s13, 2048, %s15, [#allocation3], 128, 128, 8
    $region5: #{tpu_custom_call.1} parent=1 // pred_fallthru
      _
    // Predicated region
    $region6: #{tpu_custom_call.1} parent=1 // pred_check
      _
    $region7: #{tpu_custom_call.1} parent=1 // pred_check_branch
      %22 = sbr.rel (0) target = $region9
    $region8: #{tpu_custom_call.1} parent=1 // pred_region
      %24 = dma.done [#allocation3], 2048
    $region9: #{tpu_custom_call.1} parent=1 // pred_fallthru
      _
    %v25 = vld [vmem:[#allocation2] sm:$0xff]
    %v26 = vld [vmem:[#allocation2 + $0x8] sm:$0xff]
    %v27 = vld [vmem:[#allocation2 + $0x10] sm:$0xff]
    %v28 = vld [vmem:[#allocation2 + $0x18] sm:$0xff]
    %v29 = vld [vmem:[#allocation2 + $0x20] sm:$0xff]
    %v30 = vld [vmem:[#allocation2 + $0x28] sm:$0xff]
    %v31 = vld [vmem:[#allocation2 + $0x30] sm:$0xff]
    %v32 = vld [vmem:[#allocation2 + $0x38] sm:$0xff]
    %v33 = vld [vmem:[#allocation2 + $0x40] sm:$0xff]
    %v34 = vld [vmem:[#allocation2 + $0x48] sm:$0xff]
    %v35 = vld [vmem:[#allocation2 + $0x50] sm:$0xff]
    %v36 = vld [vmem:[#allocation2 + $0x58] sm:$0xff]
    %v37 = vld [vmem:[#allocation2 + $0x60] sm:$0xff]
    %v38 = vld [vmem:[#allocation2 + $0x68] sm:$0xff]
    %v39 = vld [vmem:[#allocation2 + $0x70] sm:$0xff]
    %v40 = vld [vmem:[#allocation2 + $0x78] sm:$0xff]
    %v41 = vmul.f32 %v25, %v25
    %v42 = vmul.f32 %v26, %v26
    %v43 = vmul.f32 %v27, %v27
    %v44 = vmul.f32 %v28, %v28
    %v45 = vmul.f32 %v29, %v29
    %v46 = vmul.f32 %v30, %v30
    %v47 = vmul.f32 %v31, %v31
    %v48 = vmul.f32 %v32, %v32
    %v49 = vmul.f32 %v33, %v33
    %v50 = vmul.f32 %v34, %v34
    %v51 = vmul.f32 %v35, %v35
    %v52 = vmul.f32 %v36, %v36
    %v53 = vmul.f32 %v37, %v37
    %v54 = vmul.f32 %v38, %v38
    %v55 = vmul.f32 %v39, %v39
    %v56 = vmul.f32 %v40, %v40
    %57 = vadd.xlane.f32.xlu0 %v41
    %v58 = vpop.xlane.xlu0 %57
    %59 = vadd.xlane.f32.xlu0 %v42
    %v60 = vpop.xlane.xlu0 %59
    %61 = vadd.xlane.f32.xlu0 %v43
    %v62 = vpop.xlane.xlu0 %61
    %63 = vadd.xlane.f32.xlu0 %v44
    %v64 = vpop.xlane.xlu0 %63
    %65 = vadd.xlane.f32.xlu0 %v45
    %v66 = vpop.xlane.xlu0 %65
    %67 = vadd.xlane.f32.xlu0 %v46
    %v68 = vpop.xlane.xlu0 %67
    %69 = vadd.xlane.f32.xlu0 %v47
    %v70 = vpop.xlane.xlu0 %69
    %71 = vadd.xlane.f32.xlu0 %v48
    %v72 = vpop.xlane.xlu0 %71
    %73 = vadd.xlane.f32.xlu0 %v49
    %v74 = vpop.xlane.xlu0 %73
    %75 = vadd.xlane.f32.xlu0 %v50
    %v76 = vpop.xlane.xlu0 %75
    %77 = vadd.xlane.f32.xlu0 %v51
    %v78 = vpop.xlane.xlu0 %77
    %79 = vadd.xlane.f32.xlu0 %v52
    %v80 = vpop.xlane.xlu0 %79
    %81 = vadd.xlane.f32.xlu0 %v53
    %v82 = vpop.xlane.xlu0 %81
    %83 = vadd.xlane.f32.xlu0 %v54
    %v84 = vpop.xlane.xlu0 %83
    %85 = vadd.xlane.f32.xlu0 %v55
    %v86 = vpop.xlane.xlu0 %85
    %87 = vadd.xlane.f32.xlu0 %v56
    %v88 = vpop.xlane.xlu0 %87
    %v89 = vmax.f32 %v58, 1e-16
    %v90 = vmax.f32 %v60, 1e-16
    %v91 = vmax.f32 %v62, 1e-16
    %v92 = vmax.f32 %v64, 1e-16
    %v93 = vmax.f32 %v66, 1e-16
    %v94 = vmax.f32 %v68, 1e-16
    %v95 = vmax.f32 %v70, 1e-16
    %v96 = vmax.f32 %v72, 1e-16
    %v97 = vmax.f32 %v74, 1e-16
    %v98 = vmax.f32 %v76, 1e-16
    %v99 = vmax.f32 %v78, 1e-16
    %v100 = vmax.f32 %v80, 1e-16
    %v101 = vmax.f32 %v82, 1e-16
    %v102 = vmax.f32 %v84, 1e-16
    %v103 = vmax.f32 %v86, 1e-16
    %v104 = vmax.f32 %v88, 1e-16
    %v105 = vrsqrt.pop %v89
    %v106 = vmul.f32 %v105, %v89
    %v107 = vmul.f32 %v106, %v105
    %v108 = vmul.f32 0.5, %v107
    %v109 = vsub.f32 1.5, %v108
    %v110 = vmul.f32 %v105, %v109
    %vm111 = vweird.f32 %v89
    %vm112 = vweird.f32 %v105
    %vm113 = vmor %vm111, %vm112
    %v114 = vsel %vm113, %v105, %v110
    %v115 = vrsqrt.pop %v90
    %v116 = vmul.f32 %v115, %v90
    %v117 = vmul.f32 %v116, %v115
    %v118 = vmul.f32 0.5, %v117
    %v119 = vsub.f32 1.5, %v118
    %v120 = vmul.f32 %v115, %v119
    %vm121 = vweird.f32 %v90
    %vm122 = vweird.f32 %v115
    %vm123 = vmor %vm121, %vm122
    %v124 = vsel %vm123, %v115, %v120
    %v125 = vrsqrt.pop %v91
    %v126 = vmul.f32 %v125, %v91
    %v127 = vmul.f32 %v126, %v125
    %v128 = vmul.f32 0.5, %v127
    %v129 = vsub.f32 1.5, %v128
    %v130 = vmul.f32 %v125, %v129
    %vm131 = vweird.f32 %v91
    %vm132 = vweird.f32 %v125
    %vm133 = vmor %vm131, %vm132
    %v134 = vsel %vm133, %v125, %v130
    %v135 = vrsqrt.pop %v92
    %v136 = vmul.f32 %v135, %v92
    %v137 = vmul.f32 %v136, %v135
    %v138 = vmul.f32 0.5, %v137
    %v139 = vsub.f32 1.5, %v138
    %v140 = vmul.f32 %v135, %v139
    %vm141 = vweird.f32 %v92
    %vm142 = vweird.f32 %v135
    %vm143 = vmor %vm141, %vm142
    %v144 = vsel %vm143, %v135, %v140
    %v145 = vrsqrt.pop %v93
    %v146 = vmul.f32 %v145, %v93
    %v147 = vmul.f32 %v146, %v145
    %v148 = vmul.f32 0.5, %v147
    %v149 = vsub.f32 1.5, %v148
    %v150 = vmul.f32 %v145, %v149
    %vm151 = vweird.f32 %v93
    %vm152 = vweird.f32 %v145
    %vm153 = vmor %vm151, %vm152
    %v154 = vsel %vm153, %v145, %v150
    %v155 = vrsqrt.pop %v94
    %v156 = vmul.f32 %v155, %v94
    %v157 = vmul.f32 %v156, %v155
    %v158 = vmul.f32 0.5, %v157
    %v159 = vsub.f32 1.5, %v158
    %v160 = vmul.f32 %v155, %v159
    %vm161 = vweird.f32 %v94
    %vm162 = vweird.f32 %v155
    %vm163 = vmor %vm161, %vm162
    %v164 = vsel %vm163, %v155, %v160
    %v165 = vrsqrt.pop %v95
    %v166 = vmul.f32 %v165, %v95
    %v167 = vmul.f32 %v166, %v165
    %v168 = vmul.f32 0.5, %v167
    %v169 = vsub.f32 1.5, %v168
    %v170 = vmul.f32 %v165, %v169
    %vm171 = vweird.f32 %v95
    %vm172 = vweird.f32 %v165
    %vm173 = vmor %vm171, %vm172
    %v174 = vsel %vm173, %v165, %v170
    %v175 = vrsqrt.pop %v96
    %v176 = vmul.f32 %v175, %v96
    %v177 = vmul.f32 %v176, %v175
    %v178 = vmul.f32 0.5, %v177
    %v179 = vsub.f32 1.5, %v178
    %v180 = vmul.f32 %v175, %v179
    %vm181 = vweird.f32 %v96
    %vm182 = vweird.f32 %v175
    %vm183 = vmor %vm181, %vm182
    %v184 = vsel %vm183, %v175, %v180
    %v185 = vrsqrt.pop %v97
    %v186 = vmul.f32 %v185, %v97
    %v187 = vmul.f32 %v186, %v185
    %v188 = vmul.f32 0.5, %v187
    %v189 = vsub.f32 1.5, %v188
    %v190 = vmul.f32 %v185, %v189
    %vm191 = vweird.f32 %v97
    %vm192 = vweird.f32 %v185
    %vm193 = vmor %vm191, %vm192
    %v194 = vsel %vm193, %v185, %v190
    %v195 = vrsqrt.pop %v98
    %v196 = vmul.f32 %v195, %v98
    %v197 = vmul.f32 %v196, %v195
    %v198 = vmul.f32 0.5, %v197
    %v199 = vsub.f32 1.5, %v198
    %v200 = vmul.f32 %v195, %v199
    %vm201 = vweird.f32 %v98
    %vm202 = vweird.f32 %v195
    %vm203 = vmor %vm201, %vm202
    %v204 = vsel %vm203, %v195, %v200
    %v205 = vrsqrt.pop %v99
    %v206 = vmul.f32 %v205, %v99
    %v207 = vmul.f32 %v206, %v205
    %v208 = vmul.f32 0.5, %v207
    %v209 = vsub.f32 1.5, %v208
    %v210 = vmul.f32 %v205, %v209
    %vm211 = vweird.f32 %v99
    %vm212 = vweird.f32 %v205
    %vm213 = vmor %vm211, %vm212
    %v214 = vsel %vm213, %v205, %v210
    %v215 = vrsqrt.pop %v100
    %v216 = vmul.f32 %v215, %v100
    %v217 = vmul.f32 %v216, %v215
    %v218 = vmul.f32 0.5, %v217
    %v219 = vsub.f32 1.5, %v218
    %v220 = vmul.f32 %v215, %v219
    %vm221 = vweird.f32 %v100
    %vm222 = vweird.f32 %v215
    %vm223 = vmor %vm221, %vm222
    %v224 = vsel %vm223, %v215, %v220
    %v225 = vrsqrt.pop %v101
    %v226 = vmul.f32 %v225, %v101
    %v227 = vmul.f32 %v226, %v225
    %v228 = vmul.f32 0.5, %v227
    %v229 = vsub.f32 1.5, %v228
    %v230 = vmul.f32 %v225, %v229
    %vm231 = vweird.f32 %v101
    %vm232 = vweird.f32 %v225
    %vm233 = vmor %vm231, %vm232
    %v234 = vsel %vm233, %v225, %v230
    %v235 = vrsqrt.pop %v102
    %v236 = vmul.f32 %v235, %v102
    %v237 = vmul.f32 %v236, %v235
    %v238 = vmul.f32 0.5, %v237
    %v239 = vsub.f32 1.5, %v238
    %v240 = vmul.f32 %v235, %v239
    %vm241 = vweird.f32 %v102
    %vm242 = vweird.f32 %v235
    %vm243 = vmor %vm241, %vm242
    %v244 = vsel %vm243, %v235, %v240
    %v245 = vrsqrt.pop %v103
    %v246 = vmul.f32 %v245, %v103
    %v247 = vmul.f32 %v246, %v245
    %v248 = vmul.f32 0.5, %v247
    %v249 = vsub.f32 1.5, %v248
    %v250 = vmul.f32 %v245, %v249
    %vm251 = vweird.f32 %v103
    %vm252 = vweird.f32 %v245
    %vm253 = vmor %vm251, %vm252
    %v254 = vsel %vm253, %v245, %v250
    %v255 = vrsqrt.pop %v104
    %v256 = vmul.f32 %v255, %v104
    %v257 = vmul.f32 %v256, %v255
    %v258 = vmul.f32 0.5, %v257
    %v259 = vsub.f32 1.5, %v258
    %v260 = vmul.f32 %v255, %v259
    %vm261 = vweird.f32 %v104
    %vm262 = vweird.f32 %v255
    %vm263 = vmor %vm261, %vm262
    %v264 = vsel %vm263, %v255, %v260
    %v265 = vmul.f32 %v25, %v114
    %v266 = vmul.f32 %v26, %v124
    %v267 = vmul.f32 %v27, %v134
    %v268 = vmul.f32 %v28, %v144
    %v269 = vmul.f32 %v29, %v154
    %v270 = vmul.f32 %v30, %v164
    %v271 = vmul.f32 %v31, %v174
    %v272 = vmul.f32 %v32, %v184
    %v273 = vmul.f32 %v33, %v194
    %v274 = vmul.f32 %v34, %v204
    %v275 = vmul.f32 %v35, %v214
    %v276 = vmul.f32 %v36, %v224
    %v277 = vmul.f32 %v37, %v234
    %v278 = vmul.f32 %v38, %v244
    %v279 = vmul.f32 %v39, %v254
    %v280 = vmul.f32 %v40, %v264
    %v281 = vpack.c.bf16 %v265, %v265
    %v282 = vpack.c.bf16 %v266, %v266
    %v283 = vpack.c.bf16 %v267, %v267
    %v284 = vpack.c.bf16 %v268, %v268
    %v285 = vpack.c.bf16 %v269, %v269
    %v286 = vpack.c.bf16 %v270, %v270
    %v287 = vpack.c.bf16 %v271, %v271
    %v288 = vpack.c.bf16 %v272, %v272
    %v289 = vpack.c.bf16 %v273, %v273
    %v290 = vpack.c.bf16 %v274, %v274
    %v291 = vpack.c.bf16 %v275, %v275
    %v292 = vpack.c.bf16 %v276, %v276
    %v293 = vpack.c.bf16 %v277, %v277
    %v294 = vpack.c.bf16 %v278, %v278
    %v295 = vpack.c.bf16 %v279, %v279
    %v296 = vpack.c.bf16 %v280, %v280
    %297 = vst [vmem:[#allocation5] sm:$0xf] %v281
    %298 = vst [vmem:[#allocation5 + $0x4] sm:$0xf] %v282
    %299 = vst [vmem:[#allocation5 + $0x8] sm:$0xf] %v283
    %300 = vst [vmem:[#allocation5 + $0xc] sm:$0xf] %v284
    %301 = vst [vmem:[#allocation5 + $0x10] sm:$0xf] %v285
    %302 = vst [vmem:[#allocation5 + $0x14] sm:$0xf] %v286
    %303 = vst [vmem:[#allocation5 + $0x18] sm:$0xf] %v287
    %304 = vst [vmem:[#allocation5 + $0x1c] sm:$0xf] %v288
    %305 = vst [vmem:[#allocation5 + $0x20] sm:$0xf] %v289
    %306 = vst [vmem:[#allocation5 + $0x24] sm:$0xf] %v290
    %307 = vst [vmem:[#allocation5 + $0x28] sm:$0xf] %v291
    %308 = vst [vmem:[#allocation5 + $0x2c] sm:$0xf] %v292
    %309 = vst [vmem:[#allocation5 + $0x30] sm:$0xf] %v293
    %310 = vst [vmem:[#allocation5 + $0x34] sm:$0xf] %v294
    %311 = vst [vmem:[#allocation5 + $0x38] sm:$0xf] %v295
    %312 = vst [vmem:[#allocation5 + $0x3c] sm:$0xf] %v296
    // Predicated region
    $region10: #{tpu_custom_call.1} parent=1 // pred_check
      _
    $region11: #{tpu_custom_call.1} parent=1 // pred_check_branch
      %314 = sbr.rel (0) target = $region13
    $region12: #{tpu_custom_call.1} parent=1 // pred_region
      %316 = vsyncadd [#allocation4], 0
      %s317 = sshll.u32 [#allocation5], 4
      %s318 = int_to_ptr.vmem [resolvable:$true] %s317
      %s319 = sshll.u32 %s1, 4
      %s320 = int_to_ptr.hbm [resolvable:$true] %s319
      %325 = dma.vmem_to_hbm [thread:$0]  %s318, 1024, %s320, [#allocation4], 64, 64, 4
    $region13: #{tpu_custom_call.1} parent=1 // pred_fallthru
      _
    // Predicated region
    $region14: #{tpu_custom_call.1} parent=1 // pred_check
      _
    $region15: #{tpu_custom_call.1} parent=1 // pred_check_branch
      %327 = sbr.rel (0) target = $region17
    $region16: #{tpu_custom_call.1} parent=1 // pred_region
      %329 = dma.done [#allocation4], 1024
    $region17: #{tpu_custom_call.1} parent=1 // pred_fallthru
      _
    %330 = vsyncpa [#allocation3], 1
    %331 = vsyncpa [#allocation4], 1

</llo_original>
